<compile_context>
chip_gen: v7x
topology: tpu7x:2x2x1
jax: 0.10.0
libtpu: 0.0.40
codegen_flags: <defaults>
</compile_context>

<pallas_src>
import jax
import jax.numpy as jnp
from jax.experimental import pallas as pl
from jax.experimental.pallas import tpu as pltpu


def _round_up(x, m):
    return (x + m - 1) // m * m


def _cdiv(a, b):
    return (a + b - 1) // b


def _vmem_limit_bytes():
    """Generation-aware VMEM limit (v7x: 64 MiB/TC, v5e/v6e: 128 MiB)."""
    try:
        info = pltpu.get_tpu_info()
        cap = int(getattr(info, "vmem_capacity_bytes", 64 * 1024 * 1024))
    except Exception:
        cap = 64 * 1024 * 1024
    # 75% of physical VMEM, capped at 100 MiB; leaves compiler headroom.
    return min(cap * 3 // 4, 100 * 1024 * 1024)


def _tile_and_pad(dim, max_tile, align):
    """Pick a tile (multiple of `align`, <= max_tile-ish) and the padded
    extent it exactly divides, minimizing padding."""
    padded_min = _round_up(dim, align)
    tile = min(max_tile, padded_min)
    n_blocks = _cdiv(padded_min, tile)
    tile = _round_up(_cdiv(padded_min, n_blocks), align)
    padded = tile * n_blocks
    return tile, padded, n_blocks


def _choose_tiling(B, K, N, vmem_budget):
    # Big tiles amortize the ~0.35us/grid-step overhead and reach the HBM
    # roofline; tm tries to cover the whole padded batch so the weight matrix
    # is read from HBM exactly once per call.
    tm_max, tn_max, tk_max = 1024, 512, 1024
    while True:
        tm, Mp, gm = _tile_and_pad(B, tm_max, 8)
        tk, Kp, gk = _tile_and_pad(K, tk_max, 128)
        tn, Np, gn = _tile_and_pad(N, tn_max, 128)
        # Double-buffered f32 footprint: x, weight, output tiles (+ tiny bias).
        footprint = 4 * (2 * tm * tk + 2 * tk * tn + 2 * tm * tn + 2 * tn)
        if footprint <= vmem_budget:
            break
        if tk_max > 512:
            tk_max //= 2
        elif tm_max > 256:
            tm_max //= 2
        elif tn_max > 256:
            tn_max //= 2
        else:
            break  # smallest sane config
    # v7x megacore: guarantee >= 2 blocks along a "parallel" axis when the
    # shape allows, so both TensorCores get work (harmless on v5e/v6e).
    if gm == 1 and gn == 1 and tn > 128:
        tn, Np, gn = _tile_and_pad(N, max(128, (tn // 2) // 128 * 128), 128)
    return (tm, tn, tk), (Mp, Np, Kp), (gm, gn, gk)


def _linear_kernel(x_ref, w_ref, b_ref, o_ref):
    # x_ref: (tm, tk) f32, w_ref: (tk, tn) f32 -> plain MXU matmul (weight was
    # pre-transposed to (K, N) once at model load; no in-kernel transpose).
    k = pl.program_id(2)
    partial = jnp.dot(x_ref[...], w_ref[...], preferred_element_type=jnp.float32)

    # Output is f32: accumulate directly into o_ref (resident across the
    # reduction axis). Bias fused into the first K step.
    @pl.when(k == 0)
    def _():
        o_ref[...] = partial + b_ref[...]

    @pl.when(k != 0)
    def _():
        o_ref[...] = o_ref[...] + partial


def prepare_linear_params(weight, bias, Np, Kp):
    """One-time (model-load) layout prep: weight (N,K) -> padded (Kp,Np),
    bias (N,) -> padded (1,Np). Keeps pads/transposes off the per-call path."""
    N, K = weight.shape
    w_kn = jnp.pad(weight.T, ((0, Kp - K), (0, Np - N)))
    b2d = jnp.pad(bias, (0, Np - N)).reshape(1, Np)
    return w_kn, b2d


def linear_perceptron(x, weight, bias):
    """Equivalent of nn.Linear(in_layers, out_layers)(x) = x @ weight.T + bias.

    x:      (B, K) float32
    weight: (N, K) float32  (PyTorch layout)
    bias:   (N,)   float32
    returns (B, N) float32
    """
    B, K = x.shape
    N, K2 = weight.shape
    assert K == K2 and bias.shape == (N,)

    vmem_limit = _vmem_limit_bytes()
    (tm, tn, tk), (Mp, Np, Kp), (gm, gn, gk) = _choose_tiling(B, K, N, vmem_limit)

    # NOTE: in a real model this is done once at init, not every forward.
    w_kn, b2d = prepare_linear_params(weight, bias, Np, Kp)

    if (Mp, Kp) != (B, K):
        x = jnp.pad(x, ((0, Mp - B), (0, Kp - K)))

    out = pl.pallas_call(
        _linear_kernel,
        out_shape=jax.ShapeDtypeStruct((Mp, Np), jnp.float32),
        grid=(gm, gn, gk),
        in_specs=[
            pl.BlockSpec((tm, tk), lambda i, j, k: (i, k)),   # x tile
            pl.BlockSpec((tk, tn), lambda i, j, k: (k, j)),   # weight tile (K, N)
            pl.BlockSpec((1, tn), lambda i, j, k: (0, j)),    # bias tile
        ],
        out_specs=pl.BlockSpec((tm, tn), lambda i, j, k: (i, j)),
        compiler_params=pltpu.CompilerParams(
            dimension_semantics=("parallel", "parallel", "arbitrary"),
            vmem_limit_bytes=vmem_limit,
        ),
    )(x, w_kn, b2d)

    if (Mp, Np) != (B, N):
        out = out[:B, :N]
    return out


if __name__ == "__main__":
    # Small shapes consistent with the module: in_layers=32, out_layers=16, batch=8.
    in_layers, out_layers, batch = 32, 16, 8

    key = jax.random.PRNGKey(0)
    kx, kw, kb = jax.random.split(key, 3)

    # Deterministic parameter init (mimics nn.Linear's uniform(-1/sqrt(fan_in), ...)).
    bound = 1.0 / (in_layers ** 0.5)
    weight = jax.random.uniform(kw, (out_layers, in_layers), jnp.float32, -bound, bound)
    bias = jax.random.uniform(kb, (out_layers,), jnp.float32, -bound, bound)
    x = jax.random.normal(kx, (batch, in_layers), jnp.float32)

    out = linear_perceptron(x, weight, bias)
    out = jax.block_until_ready(out)

    # Sanity check against plain JAX reference.
    ref = x @ weight.T + bias
    assert out.shape == (batch, out_layers)
    assert jnp.allclose(out, ref, atol=1e-5, rtol=1e-5)

    print("KERNEL_OK")
</pallas_src>

<mosaic_0001>
module attributes {stable_mosaic.version = 11 : i64} {
  func.func @_linear_kernel(%arg0: i32, %arg1: i32, %arg2: i32, %arg3: memref<8x128xf32, #tpu.memory_space<vmem>>, %arg4: memref<128x128xf32, #tpu.memory_space<vmem>>, %arg5: memref<1x128xf32, #tpu.memory_space<vmem>>, %arg6: memref<8x128xf32, #tpu.memory_space<vmem>>) attributes {dimension_semantics = [#tpu.dimension_semantics<parallel>, #tpu.dimension_semantics<parallel>, #tpu.dimension_semantics<arbitrary>], iteration_bounds = array<i64: 1, 1, 1>, scalar_prefetch = 0 : i64, scratch_operands = 0 : i64, tpu.core_type = #tpu.core_type<tc>, window_params = [{transform_indices = @transform_0, window_bounds = array<i64: 8, 128>}, {transform_indices = @transform_1, window_bounds = array<i64: 128, 128>}, {transform_indices = @transform_2, window_bounds = array<i64: 1, 128>}, {transform_indices = @transform_3, window_bounds = array<i64: 8, 128>}]} {
    %c0 = arith.constant 0 : index
    %c0_0 = arith.constant 0 : index
    %0 = vector.load %arg3[%c0, %c0_0] : memref<8x128xf32, #tpu.memory_space<vmem>>, vector<8x128xf32>
    %c0_1 = arith.constant 0 : index
    %c0_2 = arith.constant 0 : index
    %1 = vector.load %arg4[%c0_1, %c0_2] : memref<128x128xf32, #tpu.memory_space<vmem>>, vector<128x128xf32>
    %cst = arith.constant dense<0.000000e+00> : vector<8x128xf32>
    %2 = tpu.matmul %0, %1, %cst {dimension_numbers = #tpu.dot_dimension_numbers<[1], [0], [0], [1], [0, 0, 1, 1], [], []>} : vector<8x128xf32>, vector<128x128xf32>, vector<8x128xf32> -> vector<8x128xf32>
    %c0_i32 = arith.constant 0 : i32
    %3 = arith.cmpi eq, %arg2, %c0_i32 : i32
    %4 = arith.extui %3 : i1 to i32
    %c0_i32_3 = arith.constant 0 : i32
    %5 = arith.cmpi ne, %4, %c0_i32_3 : i32
    scf.if %5 {
      %c0_6 = arith.constant 0 : index
      %c0_7 = arith.constant 0 : index
      %9 = vector.load %arg5[%c0_6, %c0_7] : memref<1x128xf32, #tpu.memory_space<vmem>>, vector<1x128xf32>
      %10 = vector.broadcast %9 : vector<1x128xf32> to vector<8x128xf32>
      %11 = arith.addf %2, %10 : vector<8x128xf32>
      %c0_8 = arith.constant 0 : index
      %c0_9 = arith.constant 0 : index
      %12 = vector.load %arg6[%c0_8, %c0_9] : memref<8x128xf32, #tpu.memory_space<vmem>>, vector<8x128xf32>
      tpu.vector_store %arg6[%c0_8, %c0_9], %11 {strides = array<i32>} : memref<8x128xf32, #tpu.memory_space<vmem>>, vector<8x128xf32>,
    } else {
    }
    %c0_i32_4 = arith.constant 0 : i32
    %6 = arith.cmpi ne, %arg2, %c0_i32_4 : i32
    %7 = arith.extui %6 : i1 to i32
    %c0_i32_5 = arith.constant 0 : i32
    %8 = arith.cmpi ne, %7, %c0_i32_5 : i32
    scf.if %8 {
      %c0_6 = arith.constant 0 : index
      %c0_7 = arith.constant 0 : index
      %9 = vector.load %arg6[%c0_6, %c0_7] : memref<8x128xf32, #tpu.memory_space<vmem>>, vector<8x128xf32>
      %10 = arith.addf %9, %2 : vector<8x128xf32>
      %c0_8 = arith.constant 0 : index
      %c0_9 = arith.constant 0 : index
      %11 = vector.load %arg6[%c0_8, %c0_9] : memref<8x128xf32, #tpu.memory_space<vmem>>, vector<8x128xf32>
      tpu.vector_store %arg6[%c0_8, %c0_9], %10 {strides = array<i32>} : memref<8x128xf32, #tpu.memory_space<vmem>>, vector<8x128xf32>,
    } else {
    }
    return
  }
  func.func @transform_0(%arg0: i32, %arg1: i32, %arg2: i32) -> (i32, i32) {
    %c0_i32 = arith.constant 0 : i32
    return %arg0, %arg2 : i32, i32
  }
  func.func @transform_1(%arg0: i32, %arg1: i32, %arg2: i32) -> (i32, i32) {
    %c0_i32 = arith.constant 0 : i32
    return %arg2, %arg1 : i32, i32
  }
  func.func @transform_2(%arg0: i32, %arg1: i32, %arg2: i32) -> (i32, i32) {
    %c0_i32 = arith.constant 0 : i32
    %c0_i32_0 = arith.constant 0 : i32
    return %c0_i32, %arg1 : i32, i32
  }
  func.func @transform_3(%arg0: i32, %arg1: i32, %arg2: i32) -> (i32, i32) {
    %c0_i32 = arith.constant 0 : i32
    return %arg0, %arg1 : i32, i32
  }
}

</mosaic_0001>

<llo_original>
// kernel: tpu_custom_call.1
$region0: #{tpu_custom_call.1}
  #allocation0 [shape = 'u32[]', space=smem, size = 0x4, offset = 0x4, fixed_abs, tag = 'smem constant byte address 0x4 - core index']
  #allocation1 [shape = 'u32[144,128]{1,0:T(1,128)}', space=vmem, size = 0x12000, scoped, tag = 'internal scratch']
  %s0 = inlined_call_operand.hbm [shape: f32[8,128], index: 0, kind: input, shape index: {}]
  %s1 = inlined_call_operand.hbm [shape: f32[128,128], index: 1, kind: input, shape index: {}]
  %s2 = inlined_call_operand.vmem [shape: f32[1,128], index: 2, kind: input, shape index: {}]
  %s3 = inlined_call_operand.hbm [shape: f32[8,128], index: 3, kind: output, shape index: {}]
  %s4 = sld [smem:[#allocation0]]
  $region38: #{tpu_custom_call.1} parent=0
    _
  %s6 = ssub.s32 1, %s4
  %s7 = scalar_select 0, %s6, %s4
  $region1: #{tpu_custom_call.1} parent=0
    #allocation2 [shape = 'u8[4096]{0}', space=vmem, size = 0x1000, scoped, tag = 'input window, operand 0, single buffered']
    #allocation3 [shape = 's32[1]{0}', space=sflag, size = 0x4, scoped, tag = 'scoped memory for tpu_custom_call.1']
    #allocation4 [shape = 's32[1]{0}', space=sflag, size = 0x4, scoped, tag = 'scoped memory for tpu_custom_call.1']
    #allocation5 [shape = 'u8[65536]{0}', space=vmem, size = 0x10000, scoped, tag = 'input window, operand 1, single buffered']
    #allocation6 [shape = 's32[1]{0}', space=sflag, size = 0x4, scoped, tag = 'scoped memory for tpu_custom_call.1']
    #allocation7 [shape = 'u8[4096]{0}', space=vmem, size = 0x1000, scoped, tag = 'output window, operand 0, single buffered']
    %8 = vsyncpa [#allocation3], 0
    %9 = vsyncpa [#allocation6], 0
    %10 = vsyncpa [#allocation4], 0
    // Predicated region
    $region2: #{tpu_custom_call.1} parent=1 // pred_check
      _
    $region3: #{tpu_custom_call.1} parent=1 // pred_check_branch
      %12 = sbr.rel (0) target = $region5
    $region4: #{tpu_custom_call.1} parent=1 // pred_region
      %s14 = ssub.s32 128, 128
      %15 = vsyncadd [#allocation3], %s14
      %s17 = sshll.u32 [#allocation2], 4
      %s18 = int_to_ptr.vmem [resolvable:$true] %s17
      %20 = dma.hbm_to_vmem [thread:$0]  %s0, 128, %s18, [#allocation3]
    $region5: #{tpu_custom_call.1} parent=1 // pred_fallthru
      _
    // Predicated region
    $region6: #{tpu_custom_call.1} parent=1 // pred_check
      _
    $region7: #{tpu_custom_call.1} parent=1 // pred_check_branch
      %22 = sbr.rel (0) target = $region9
    $region8: #{tpu_custom_call.1} parent=1 // pred_region
      %s24 = ssub.s32 2048, 2048
      %25 = vsyncadd [#allocation6], %s24
      %s26 = sshll.u32 [#allocation5], 4
      %s27 = int_to_ptr.vmem [resolvable:$true] %s26
      %32 = dma.hbm_to_vmem [thread:$0]  %s1, 2048, %s27, [#allocation6], 128, 128, 8
    $region9: #{tpu_custom_call.1} parent=1 // pred_fallthru
      _
    // Predicated region
    $region10: #{tpu_custom_call.1} parent=1 // pred_check
      _
    $region11: #{tpu_custom_call.1} parent=1 // pred_check_branch
      %34 = sbr.rel (0) target = $region13
    $region12: #{tpu_custom_call.1} parent=1 // pred_region
      _
    $region13: #{tpu_custom_call.1} parent=1 // pred_fallthru
      _
    // Predicated region
    $region14: #{tpu_custom_call.1} parent=1 // pred_check
      _
    $region15: #{tpu_custom_call.1} parent=1 // pred_check_branch
      %36 = sbr.rel (0) target = $region17
    $region16: #{tpu_custom_call.1} parent=1 // pred_region
      %37 = dma.done [#allocation3], 128
    $region17: #{tpu_custom_call.1} parent=1 // pred_fallthru
      _
    // Predicated region
    $region18: #{tpu_custom_call.1} parent=1 // pred_check
      _
    $region19: #{tpu_custom_call.1} parent=1 // pred_check_branch
      %39 = sbr.rel (0) target = $region21
    $region20: #{tpu_custom_call.1} parent=1 // pred_region
      %40 = dma.done [#allocation6], 2048
    $region21: #{tpu_custom_call.1} parent=1 // pred_fallthru
      _
    %v41 = vld [vmem:[#allocation2] sm:$0xff]
    %v42 = vld [vmem:[#allocation5] sm:$0xff]
    %v43 = vld [vmem:[#allocation5 + $0x8] sm:$0xff]
    %v44 = vld [vmem:[#allocation5 + $0x10] sm:$0xff]
    %v45 = vld [vmem:[#allocation5 + $0x18] sm:$0xff]
    %v46 = vld [vmem:[#allocation5 + $0x20] sm:$0xff]
    %v47 = vld [vmem:[#allocation5 + $0x28] sm:$0xff]
    %v48 = vld [vmem:[#allocation5 + $0x30] sm:$0xff]
    %v49 = vld [vmem:[#allocation5 + $0x38] sm:$0xff]
    %v50 = vld [vmem:[#allocation5 + $0x40] sm:$0xff]
    %v51 = vld [vmem:[#allocation5 + $0x48] sm:$0xff]
    %v52 = vld [vmem:[#allocation5 + $0x50] sm:$0xff]
    %v53 = vld [vmem:[#allocation5 + $0x58] sm:$0xff]
    %v54 = vld [vmem:[#allocation5 + $0x60] sm:$0xff]
    %v55 = vld [vmem:[#allocation5 + $0x68] sm:$0xff]
    %v56 = vld [vmem:[#allocation5 + $0x70] sm:$0xff]
    %v57 = vld [vmem:[#allocation5 + $0x78] sm:$0xff]
    %58 = vmatprep.subr.mxu0 0.0
    %59 = vmatpush1.msra.mxu0 %v42
    %60 = vmatprep.subr.mxu0 0.0
    %61 = vmatpush1.msra.mxu0 %v43
    %62 = vmatprep.subr.mxu0 0.0
    %63 = vmatpush1.msra.mxu0 %v44
    %64 = vmatprep.subr.mxu0 0.0
    %65 = vmatpush1.msra.mxu0 %v45
    %66 = vmatprep.subr.mxu0 0.0
    %67 = vmatpush1.msra.mxu0 %v46
    %68 = vmatprep.subr.mxu0 0.0
    %69 = vmatpush1.msra.mxu0 %v47
    %70 = vmatprep.subr.mxu0 0.0
    %71 = vmatpush1.msra.mxu0 %v48
    %72 = vmatprep.subr.mxu0 0.0
    %73 = vmatpush1.msra.mxu0 %v49
    %74 = vmatprep.subr.mxu0 0.0
    %75 = vmatpush1.msra.mxu0 %v50
    %76 = vmatprep.subr.mxu0 0.0
    %77 = vmatpush1.msra.mxu0 %v51
    %78 = vmatprep.subr.mxu0 0.0
    %79 = vmatpush1.msra.mxu0 %v52
    %80 = vmatprep.subr.mxu0 0.0
    %81 = vmatpush1.msra.mxu0 %v53
    %82 = vmatprep.subr.mxu0 0.0
    %83 = vmatpush1.msra.mxu0 %v54
    %84 = vmatprep.subr.mxu0 0.0
    %85 = vmatpush1.msra.mxu0 %v55
    %86 = vmatprep.subr.mxu0 0.0
    %87 = vmatpush1.msra.mxu0 %v56
    %88 = vmatprep.subr.mxu0 0.0
    %89 = vmatpush1.msra.mxu0 %v57
    %90 = vmatprep.subr.mxu0 0.0
    %91 = vmatpush1.msra.mxu0 0.0
    %92 = vmatprep.subr.mxu0 0.0
    %93 = vmatpush1.msra.mxu0 0.0
    %94 = vmatprep.subr.mxu0 0.0
    %95 = vmatpush1.msra.mxu0 0.0
    %96 = vmatprep.subr.mxu0 0.0
    %97 = vmatpush1.msra.mxu0 0.0
    %98 = vmatprep.subr.mxu0 0.0
    %99 = vmatpush1.msra.mxu0 0.0
    %100 = vmatprep.subr.mxu0 0.0
    %101 = vmatpush1.msra.mxu0 0.0
    %102 = vmatprep.subr.mxu0 0.0
    %103 = vmatpush1.msra.mxu0 0.0
    %104 = vmatprep.subr.mxu0 0.0
    %105 = vmatpush1.msra.mxu0 0.0
    %106 = vmatprep.subr.mxu0 0.0
    %107 = vmatpush1.msra.mxu0 0.0
    %108 = vmatprep.subr.mxu0 0.0
    %109 = vmatpush1.msra.mxu0 0.0
    %110 = vmatprep.subr.mxu0 0.0
    %111 = vmatpush1.msra.mxu0 0.0
    %112 = vmatprep.subr.mxu0 0.0
    %113 = vmatpush1.msra.mxu0 0.0
    %114 = vmatprep.subr.mxu0 0.0
    %115 = vmatpush1.msra.mxu0 0.0
    %116 = vmatprep.subr.mxu0 0.0
    %117 = vmatpush1.msra.mxu0 0.0
    %118 = vmatprep.subr.mxu0 0.0
    %119 = vmatpush1.msra.mxu0 0.0
    %120 = vmatprep.subr.mxu0 0.0
    %121 = vmatpush1.msra.mxu0 0.0
    %122 = vmatprep.mubr.f32.mxu0 0.0
    %123 = vmatmul.mubr.f32.gmra.mrb[0].mxu0 %v41
    %v124 = vpop.f32.mrb[0].mxu0
    %v125 = vadd.f32 0.0, %v124
    %v126 = vpop.f32.mrb[0].mxu0
    %127 = vdwg.mxu0
    %p128 = scmp.eq.s32.totalorder 0, 0
    // Predicated region
    $region22: #{tpu_custom_call.1} parent=1 // pred_check
      %p129 = pneg %p128
    $region23: #{tpu_custom_call.1} parent=1 // pred_check_branch
      %131 = sbr.rel (%p129) target = $region25
    $region24: #{tpu_custom_call.1} parent=1 // pred_region
      %v132 = vld [vmem:[%s2] sm:$0x1]
      %v134 = vlaneseq
      %v135 = vshrl.u32 %v134, 7
      %v136 = vsub.s32 0, %v135
      %v137 = vrot.slane %v132, %v136
      %v139 = vadd.f32 %v125, %v137
      %140 = vst [vmem:[#allocation7] sm:$0xff] %v139
    $region25: #{tpu_custom_call.1} parent=1 // pred_fallthru
      _
    %p141 = scmp.ne.s32.totalorder 0, 0
    // Predicated region
    $region26: #{tpu_custom_call.1} parent=1 // pred_check
      %p142 = pneg %p141
    $region27: #{tpu_custom_call.1} parent=1 // pred_check_branch
      %144 = sbr.rel (%p142) target = $region29
    $region28: #{tpu_custom_call.1} parent=1 // pred_region
      %v145 = vld [vmem:[#allocation7] sm:$0xff]
      %v146 = vadd.f32 %v145, %v125
      %147 = vst [vmem:[#allocation7] sm:$0xff] %v146
    $region29: #{tpu_custom_call.1} parent=1 // pred_fallthru
      _
    // Predicated region
    $region30: #{tpu_custom_call.1} parent=1 // pred_check
      _
    $region31: #{tpu_custom_call.1} parent=1 // pred_check_branch
      %149 = sbr.rel (0) target = $region33
    $region32: #{tpu_custom_call.1} parent=1 // pred_region
      %s151 = ssub.s32 128, 128
      %152 = vsyncadd [#allocation4], %s151
      %s154 = sshll.u32 [#allocation7], 4
      %s155 = int_to_ptr.vmem [resolvable:$true] %s154
      %157 = dma.vmem_to_hbm [thread:$0]  %s155, 128, %s3, [#allocation4]
    $region33: #{tpu_custom_call.1} parent=1 // pred_fallthru
      _
    // Predicated region
    $region34: #{tpu_custom_call.1} parent=1 // pred_check
      _
    $region35: #{tpu_custom_call.1} parent=1 // pred_check_branch
      %159 = sbr.rel (0) target = $region37
    $region36: #{tpu_custom_call.1} parent=1 // pred_region
      %160 = dma.done [#allocation4], 128
    $region37: #{tpu_custom_call.1} parent=1 // pred_fallthru
      _
    %161 = vsyncpa [#allocation3], 1
    %162 = vsyncpa [#allocation6], 1
    %163 = vsyncpa [#allocation4], 1

</llo_original>
